<compile_context>
chip_gen: v6e
topology: v6e:2x2x1
jax: 0.10.0
libtpu: 0.0.40
codegen_flags: <defaults>
</compile_context>

<pallas_src>
import functools

import jax
import jax.numpy as jnp
from jax.experimental import pallas as pl
from jax.experimental.pallas import tpu as pltpu

_LANE = 128      # base lane width
_SUBLANE = 8     # sublane granularity for the batch tile


def _round_up(n, m):
    return ((n + m - 1) // m) * m


def _lane_multiple_for(dim):
    """K/N alignment for the hidden matmul dims.

    v6e/v7x have a 256x256 MXU -> 256-aligned K/N when the true dim exceeds
    128; v5e (128x128 MXU), older chips and unknown targets stay at 128.
    """
    if dim <= 128:
        return _LANE
    try:
        kind = jax.devices()[0].device_kind.lower()
    except Exception:
        return _LANE
    if any(v in kind for v in ("v2", "v3", "v4", "v5")):
        return _LANE
    return 256


def _vmem_capacity_bytes():
    try:
        return int(pltpu.get_tpu_info().vmem_capacity_bytes)
    except Exception:
        # Conservative (v7x-sized) fallback if the query is unavailable.
        return 64 * 1024 * 1024


def _generator_kernel(x_ref, w1_ref, b1_ref, w2_ref, b2_ref,
                      w3_ref, b3_ref, w4_ref, b4_ref, o_ref):
    """Fused 4-layer MLP on one batch tile.

    Matmul operands may be bf16; accumulation, bias adds and element-wise
    math are f32.  Activations are cast to the compute dtype once, at the
    activation, to halve the live inter-layer intermediate.
    """
    cdt = w1_ref.dtype  # compute dtype of the matmul operands (bf16 or f32)
    exact = jnp.dtype(cdt) == jnp.dtype(jnp.float32)

    x = x_ref[...].astype(cdt)  # in-register cast; no wrapper pass over x
    h = jnp.dot(x, w1_ref[...],
                preferred_element_type=jnp.float32) + b1_ref[...]
    h = jnp.maximum(h, 0.0).astype(cdt)                       # relu

    h = jnp.dot(h, w2_ref[...],
                preferred_element_type=jnp.float32) + b2_ref[...]
    h = jnp.maximum(h, 0.0).astype(cdt)                       # relu

    z = jnp.dot(h, w3_ref[...],
                preferred_element_type=jnp.float32) + b3_ref[...]
    if exact:
        h = jax.nn.sigmoid(z)                                 # exact path
    else:
        # sigmoid(z) = 1/(1+exp(-z)); exp -> EUP, approx reciprocal -> EUP,
        # keeping the divide off the VPU (bf16 operand noise dominates).
        h = pl.reciprocal(1.0 + jnp.exp(-z), approx=True)
    h = h.astype(cdt)

    y = jnp.dot(h, w4_ref[...],
                preferred_element_type=jnp.float32) + b4_ref[...]
    o_ref[...] = y.astype(o_ref.dtype)                        # no final act.


@functools.partial(jax.jit,
                   static_argnames=("block_b", "compute_dtype", "out_dtype"))
def generator_forward(x, params, block_b=256, compute_dtype=jnp.bfloat16,
                      out_dtype=None):
    """x: (B, input_size). params: w1..w4 (in,out), b1..b4 (1,out) f32."""
    B, input_size = x.shape
    hidden_size = params["w1"].shape[1]
    output_size = params["w4"].shape[1]
    out_dtype = x.dtype if out_dtype is None else jnp.dtype(out_dtype)
    cdt = jnp.dtype(compute_dtype)

    # Hidden (matmul K/N) alignment, generation-aware.
    hid_p = _round_up(hidden_size, _lane_multiple_for(hidden_size))

    # Batch tile: multiple of 8 sublanes, clamped to the batch, and clamped
    # so grid >= 2 whenever B allows it (megacore sharding on v7x + DMA /
    # compute overlap everywhere).
    block_b = _round_up(max(int(block_b), _SUBLANE), _SUBLANE)
    block_b = min(block_b, _round_up(B, _SUBLANE))
    if B >= 2 * _SUBLANE:
        block_b = min(block_b, _round_up(-(-B // 2), _SUBLANE))
    grid = (pl.cdiv(B, block_b),)

    def pad2(a, rows, cols, dtype):
        return jnp.pad(a, ((0, rows - a.shape[0]),
                           (0, cols - a.shape[1]))).astype(dtype)

    # Zero padding is semantics-preserving: padded hidden columns get zero
    # weights+bias (relu(0)=0; sigmoid(0)=0.5 is killed by the zero-padded
    # rows of W4).  x and the output keep their natural widths.
    w1 = pad2(params["w1"], input_size, hid_p, cdt)
    w2 = pad2(params["w2"], hid_p, hid_p, cdt)
    w3 = pad2(params["w3"], hid_p, hid_p, cdt)
    w4 = pad2(params["w4"], hid_p, output_size, cdt)
    b1 = pad2(params["b1"], 1, hid_p, jnp.float32)
    b2 = pad2(params["b2"], 1, hid_p, jnp.float32)
    b3 = pad2(params["b3"], 1, hid_p, jnp.float32)
    b4 = params["b4"].astype(jnp.float32)

    def resident_spec(arr):
        # Grid-invariant block: same (0,0) every step -> DMA'd once, and
        # single-buffered so it costs 1x (not 2x) VMEM.
        return pl.BlockSpec(arr.shape, lambda i: (0, 0),
                            pipeline_mode=pl.Buffered(1))
    # TODO(synk): for very large hidden sizes where resident bf16 W2+W3 no
    # longer fit VMEM, add a K-dim grid axis (or pltpu.emit_pipeline over
    # weight slabs) instead of shrinking block_b.

    # VMEM budget: weights/biases resident once (Buffered(1)), x/out tiles
    # double-buffered, plus live f32 intermediates; cap at ~85% of physical
    # VMEM (generation-aware: 64 MiB on v7x, 128 MiB on v5e/v6e).
    vmem_cap = _vmem_capacity_bytes()
    weight_bytes = ((w1.size + w2.size + w3.size + w4.size) * cdt.itemsize
                    + (b1.size + b2.size + b3.size + b4.size) * 4)
    io_bytes = 2 * block_b * (input_size * x.dtype.itemsize
                              + output_size * out_dtype.itemsize)
    live_bytes = 4 * block_b * hid_p * 4
    vmem_limit = int(min(max(weight_bytes + io_bytes + live_bytes,
                             32 * 1024 * 1024),
                         int(0.85 * vmem_cap)))

    # Advisory cost estimate so XLA can overlap the kernel with neighbors.
    flops = 2 * B * (input_size * hid_p + 2 * hid_p * hid_p
                     + hid_p * output_size)
    transcendentals = B * hid_p                       # exp in the sigmoid
    bytes_accessed = int(x.size * x.dtype.itemsize + weight_bytes
                         + B * output_size * out_dtype.itemsize)
    cost = pl.CostEstimate(flops=flops, transcendentals=transcendentals,
                           bytes_accessed=bytes_accessed)

    out = pl.pallas_call(
        _generator_kernel,
        out_shape=jax.ShapeDtypeStruct((B, output_size), out_dtype),
        grid_spec=pltpu.PrefetchScalarGridSpec(
            num_scalar_prefetch=0,
            grid=grid,
            in_specs=[
                # x at natural width: last dim == full array dim -> legal.
                pl.BlockSpec((block_b, input_size), lambda i: (i, 0)),
                resident_spec(w1), resident_spec(b1),
                resident_spec(w2), resident_spec(b2),
                resident_spec(w3), resident_spec(b3),
                resident_spec(w4), resident_spec(b4),
            ],
            # Unpadded output block: full-dim last axis, no slice pass needed.
            out_specs=pl.BlockSpec((block_b, output_size), lambda i: (i, 0)),
        ),
        compiler_params=pltpu.CompilerParams(
            dimension_semantics=("parallel",),
            vmem_limit_bytes=vmem_limit,
        ),
        cost_estimate=cost,
    )(x, w1, b1, w2, b2, w3, b3, w4, b4)

    return out


def init_params(key, input_size, hidden_size, output_size):
    """Deterministic init mimicking PyTorch nn.Linear default U[-1/sqrt(fan_in), +]."""
    dims = [(input_size, hidden_size),
            (hidden_size, hidden_size),
            (hidden_size, hidden_size),
            (hidden_size, output_size)]
    params = {}
    for idx, (fan_in, fan_out) in enumerate(dims, start=1):
        key, kw, kb = jax.random.split(key, 3)
        bound = 1.0 / jnp.sqrt(fan_in)
        params[f"w{idx}"] = jax.random.uniform(
            kw, (fan_in, fan_out), jnp.float32, -bound, bound)
        params[f"b{idx}"] = jax.random.uniform(
            kb, (1, fan_out), jnp.float32, -bound, bound)
    return params


def reference_forward(x, params):
    h = jax.nn.relu(x @ params["w1"] + params["b1"])
    h = jax.nn.relu(h @ params["w2"] + params["b2"])
    h = jax.nn.sigmoid(h @ params["w3"] + params["b3"])
    return h @ params["w4"] + params["b4"]


if __name__ == "__main__":
    key = jax.random.PRNGKey(0)
    k_x, k_p, k_x2 = jax.random.split(key, 3)

    batch, input_size, hidden_size, output_size = 16, 16, 32, 8
    x = jax.random.normal(k_x, (batch, input_size), jnp.float32)
    params = init_params(k_p, input_size, hidden_size, output_size)

    # High-precision XLA reference (avoid bf16-truncated f32 dots on TPU).
    with jax.default_matmul_precision("highest"):
        ref = reference_forward(x, params)

    # Accurate f32 path.
    out_f32 = jax.block_until_ready(
        generator_forward(x, params, compute_dtype=jnp.float32))
    assert out_f32.shape == (batch, output_size)
    assert jnp.allclose(out_f32, ref, atol=1e-3, rtol=1e-3)

    # Default fast path: bf16 matmul operands, f32 accumulation.
    out_bf16 = jax.block_until_ready(
        generator_forward(x, params, compute_dtype=jnp.bfloat16))
    assert out_bf16.shape == (batch, output_size)
    assert jnp.allclose(out_bf16, ref, atol=5e-2, rtol=5e-2)

    # Ragged batch (B % block_b != 0) exercises Pallas edge-block clamping;
    # rows are independent so valid rows must match exactly as above.
    batch2 = 20
    x2 = jax.random.normal(k_x2, (batch2, input_size), jnp.float32)
    with jax.default_matmul_precision("highest"):
        ref2 = reference_forward(x2, params)
    out2 = jax.block_until_ready(
        generator_forward(x2, params, compute_dtype=jnp.float32))
    assert out2.shape == (batch2, output_size)
    assert jnp.allclose(out2, ref2, atol=1e-3, rtol=1e-3)

    print("KERNEL_OK")
</pallas_src>

<mosaic_0001>
module attributes {stable_mosaic.version = 11 : i64} {
  func.func @_generator_kernel(%arg0: i32, %arg1: memref<8x16xf32, #tpu.memory_space<vmem>>, %arg2: memref<16x128xf32, #tpu.memory_space<vmem>>, %arg3: memref<1x128xf32, #tpu.memory_space<vmem>>, %arg4: memref<128x128xf32, #tpu.memory_space<vmem>>, %arg5: memref<1x128xf32, #tpu.memory_space<vmem>>, %arg6: memref<128x128xf32, #tpu.memory_space<vmem>>, %arg7: memref<1x128xf32, #tpu.memory_space<vmem>>, %arg8: memref<128x8xf32, #tpu.memory_space<vmem>>, %arg9: memref<1x8xf32, #tpu.memory_space<vmem>>, %arg10: memref<8x8xf32, #tpu.memory_space<vmem>>) attributes {dimension_semantics = [#tpu.dimension_semantics<parallel>], iteration_bounds = array<i64: 2>, scalar_prefetch = 0 : i64, scratch_operands = 0 : i64, tpu.core_type = #tpu.core_type<tc>, window_params = [{transform_indices = @transform_0, window_bounds = array<i64: 8, 16>}, {pipeline_mode = #tpu.pipeline_mode<synchronous>, transform_indices = @transform_1, window_bounds = array<i64: 16, 128>}, {pipeline_mode = #tpu.pipeline_mode<synchronous>, transform_indices = @transform_2, window_bounds = array<i64: 1, 128>}, {pipeline_mode = #tpu.pipeline_mode<synchronous>, transform_indices = @transform_3, window_bounds = array<i64: 128, 128>}, {pipeline_mode = #tpu.pipeline_mode<synchronous>, transform_indices = @transform_4, window_bounds = array<i64: 1, 128>}, {pipeline_mode = #tpu.pipeline_mode<synchronous>, transform_indices = @transform_5, window_bounds = array<i64: 128, 128>}, {pipeline_mode = #tpu.pipeline_mode<synchronous>, transform_indices = @transform_6, window_bounds = array<i64: 1, 128>}, {pipeline_mode = #tpu.pipeline_mode<synchronous>, transform_indices = @transform_7, window_bounds = array<i64: 128, 8>}, {pipeline_mode = #tpu.pipeline_mode<synchronous>, transform_indices = @transform_8, window_bounds = array<i64: 1, 8>}, {transform_indices = @transform_9, window_bounds = array<i64: 8, 8>}]} {
    %c0 = arith.constant 0 : index
    %c0_0 = arith.constant 0 : index
    %0 = vector.load %arg1[%c0, %c0_0] : memref<8x16xf32, #tpu.memory_space<vmem>>, vector<8x16xf32>
    %c0_1 = arith.constant 0 : index
    %c0_2 = arith.constant 0 : index
    %1 = vector.load %arg2[%c0_1, %c0_2] : memref<16x128xf32, #tpu.memory_space<vmem>>, vector<16x128xf32>
    %cst = arith.constant dense<0.000000e+00> : vector<8x128xf32>
    %2 = tpu.matmul %0, %1, %cst {dimension_numbers = #tpu.dot_dimension_numbers<[1], [0], [0], [1], [0, 0, 1, 1], [], []>} : vector<8x16xf32>, vector<16x128xf32>, vector<8x128xf32> -> vector<8x128xf32>
    %c0_3 = arith.constant 0 : index
    %c0_4 = arith.constant 0 : index
    %3 = vector.load %arg3[%c0_3, %c0_4] : memref<1x128xf32, #tpu.memory_space<vmem>>, vector<1x128xf32>
    %4 = vector.broadcast %3 : vector<1x128xf32> to vector<8x128xf32>
    %5 = arith.addf %2, %4 : vector<8x128xf32>
    %cst_5 = arith.constant 0.000000e+00 : f32
    %6 = vector.broadcast %cst_5 : f32 to vector<8x128xf32>
    %7 = arith.maximumf %5, %6 : vector<8x128xf32>
    %c0_6 = arith.constant 0 : index
    %c0_7 = arith.constant 0 : index
    %8 = vector.load %arg4[%c0_6, %c0_7] : memref<128x128xf32, #tpu.memory_space<vmem>>, vector<128x128xf32>
    %cst_8 = arith.constant dense<0.000000e+00> : vector<8x128xf32>
    %9 = tpu.matmul %7, %8, %cst_8 {dimension_numbers = #tpu.dot_dimension_numbers<[1], [0], [0], [1], [0, 0, 1, 1], [], []>} : vector<8x128xf32>, vector<128x128xf32>, vector<8x128xf32> -> vector<8x128xf32>
    %c0_9 = arith.constant 0 : index
    %c0_10 = arith.constant 0 : index
    %10 = vector.load %arg5[%c0_9, %c0_10] : memref<1x128xf32, #tpu.memory_space<vmem>>, vector<1x128xf32>
    %11 = vector.broadcast %10 : vector<1x128xf32> to vector<8x128xf32>
    %12 = arith.addf %9, %11 : vector<8x128xf32>
    %cst_11 = arith.constant 0.000000e+00 : f32
    %13 = vector.broadcast %cst_11 : f32 to vector<8x128xf32>
    %14 = arith.maximumf %12, %13 : vector<8x128xf32>
    %c0_12 = arith.constant 0 : index
    %c0_13 = arith.constant 0 : index
    %15 = vector.load %arg6[%c0_12, %c0_13] : memref<128x128xf32, #tpu.memory_space<vmem>>, vector<128x128xf32>
    %cst_14 = arith.constant dense<0.000000e+00> : vector<8x128xf32>
    %16 = tpu.matmul %14, %15, %cst_14 {dimension_numbers = #tpu.dot_dimension_numbers<[1], [0], [0], [1], [0, 0, 1, 1], [], []>} : vector<8x128xf32>, vector<128x128xf32>, vector<8x128xf32> -> vector<8x128xf32>
    %c0_15 = arith.constant 0 : index
    %c0_16 = arith.constant 0 : index
    %17 = vector.load %arg7[%c0_15, %c0_16] : memref<1x128xf32, #tpu.memory_space<vmem>>, vector<1x128xf32>
    %18 = vector.broadcast %17 : vector<1x128xf32> to vector<8x128xf32>
    %19 = arith.addf %16, %18 : vector<8x128xf32>
    %20 = arith.negf %19 : vector<8x128xf32>
    %21 = math.exp %20 : vector<8x128xf32>
    %cst_17 = arith.constant 1.000000e+00 : f32
    %22 = vector.broadcast %cst_17 : f32 to vector<8x128xf32>
    %23 = arith.addf %22, %21 : vector<8x128xf32>
    %24 = arith.divf %22, %23 : vector<8x128xf32>
    %c0_18 = arith.constant 0 : index
    %c0_19 = arith.constant 0 : index
    %25 = vector.load %arg8[%c0_18, %c0_19] : memref<128x8xf32, #tpu.memory_space<vmem>>, vector<128x8xf32>
    %cst_20 = arith.constant dense<0.000000e+00> : vector<8x8xf32>
    %26 = tpu.matmul %24, %25, %cst_20 {dimension_numbers = #tpu.dot_dimension_numbers<[1], [0], [0], [1], [0, 0, 1, 1], [], []>} : vector<8x128xf32>, vector<128x8xf32>, vector<8x8xf32> -> vector<8x8xf32>
    %c0_21 = arith.constant 0 : index
    %c0_22 = arith.constant 0 : index
    %27 = vector.load %arg9[%c0_21, %c0_22] : memref<1x8xf32, #tpu.memory_space<vmem>>, vector<1x8xf32>
    %28 = vector.broadcast %27 : vector<1x8xf32> to vector<8x8xf32>
    %29 = arith.addf %26, %28 : vector<8x8xf32>
    %c0_23 = arith.constant 0 : index
    %c0_24 = arith.constant 0 : index
    %30 = vector.load %arg10[%c0_23, %c0_24] : memref<8x8xf32, #tpu.memory_space<vmem>>, vector<8x8xf32>
    tpu.vector_store %arg10[%c0_23, %c0_24], %29 {strides = array<i32>} : memref<8x8xf32, #tpu.memory_space<vmem>>, vector<8x8xf32>,
    return
  }
  func.func @transform_0(%arg0: i32) -> (i32, i32) {
    %c0_i32 = arith.constant 0 : i32
    %c0_i32_0 = arith.constant 0 : i32
    return %arg0, %c0_i32 : i32, i32
  }
  func.func @transform_1(%arg0: i32) -> (i32, i32) {
    %c0_i32 = arith.constant 0 : i32
    %c0_i32_0 = arith.constant 0 : i32
    %c0_i32_1 = arith.constant 0 : i32
    return %c0_i32, %c0_i32_0 : i32, i32
  }
  func.func @transform_2(%arg0: i32) -> (i32, i32) {
    %c0_i32 = arith.constant 0 : i32
    %c0_i32_0 = arith.constant 0 : i32
    %c0_i32_1 = arith.constant 0 : i32
    return %c0_i32, %c0_i32_0 : i32, i32
  }
  func.func @transform_3(%arg0: i32) -> (i32, i32) {
    %c0_i32 = arith.constant 0 : i32
    %c0_i32_0 = arith.constant 0 : i32
    %c0_i32_1 = arith.constant 0 : i32
    return %c0_i32, %c0_i32_0 : i32, i32
  }
  func.func @transform_4(%arg0: i32) -> (i32, i32) {
    %c0_i32 = arith.constant 0 : i32
    %c0_i32_0 = arith.constant 0 : i32
    %c0_i32_1 = arith.constant 0 : i32
    return %c0_i32, %c0_i32_0 : i32, i32
  }
  func.func @transform_5(%arg0: i32) -> (i32, i32) {
    %c0_i32 = arith.constant 0 : i32
    %c0_i32_0 = arith.constant 0 : i32
    %c0_i32_1 = arith.constant 0 : i32
    return %c0_i32, %c0_i32_0 : i32, i32
  }
  func.func @transform_6(%arg0: i32) -> (i32, i32) {
    %c0_i32 = arith.constant 0 : i32
    %c0_i32_0 = arith.constant 0 : i32
    %c0_i32_1 = arith.constant 0 : i32
    return %c0_i32, %c0_i32_0 : i32, i32
  }
  func.func @transform_7(%arg0: i32) -> (i32, i32) {
    %c0_i32 = arith.constant 0 : i32
    %c0_i32_0 = arith.constant 0 : i32
    %c0_i32_1 = arith.constant 0 : i32
    return %c0_i32, %c0_i32_0 : i32, i32
  }
  func.func @transform_8(%arg0: i32) -> (i32, i32) {
    %c0_i32 = arith.constant 0 : i32
    %c0_i32_0 = arith.constant 0 : i32
    %c0_i32_1 = arith.constant 0 : i32
    return %c0_i32, %c0_i32_0 : i32, i32
  }
  func.func @transform_9(%arg0: i32) -> (i32, i32) {
    %c0_i32 = arith.constant 0 : i32
    %c0_i32_0 = arith.constant 0 : i32
    return %arg0, %c0_i32 : i32, i32
  }
}

</mosaic_0001>

<llo_original>
// kernel: generator_forward.1
$region0: #{generator_forward.1}
  #allocation0 [shape = 'u32[]', space=smem, size = 0x4, offset = 0x4, fixed_abs, tag = 'smem constant byte address 0x4 - core index']
  #allocation1 [shape = 'u32[144,128]{1,0:T(1,128)}', space=vmem, size = 0x12000, scoped, tag = 'internal scratch']
  %s0 = inlined_call_operand.vmem [shape: f32[16,16], index: 0, kind: input, shape index: {}]
  %s1 = inlined_call_operand.vmem [shape: f32[16,128], index: 1, kind: input, shape index: {}]
  %s2 = inlined_call_operand.vmem [shape: f32[1,128], index: 2, kind: input, shape index: {}]
  %s3 = inlined_call_operand.vmem [shape: f32[128,128], index: 3, kind: input, shape index: {}]
  %s4 = inlined_call_operand.vmem [shape: f32[1,128], index: 4, kind: input, shape index: {}]
  %s5 = inlined_call_operand.vmem [shape: f32[128,128], index: 5, kind: input, shape index: {}]
  %s6 = inlined_call_operand.vmem [shape: f32[1,128], index: 6, kind: input, shape index: {}]
  %s7 = inlined_call_operand.vmem [shape: f32[128,8], index: 7, kind: input, shape index: {}]
  %s8 = inlined_call_operand.vmem [shape: f32[1,8], index: 8, kind: input, shape index: {}]
  %s9 = inlined_call_operand.vmem [shape: f32[16,8], index: 9, kind: output, shape index: {}]
  %s10 = sld [smem:[#allocation0]]
  $region69: #{generator_forward.1} parent=0
    _
  %s12 = ssub.s32 1, %s10
  %s13 = scalar_select 0, %s12, %s10
  loop: start=0, step=1, limit=4
  $region2: #{generator_forward.1} parent=0 // loop_pre_header
    _
  $region3: #{generator_forward.1} parent=0 // loop_header
    %s15 = sphi 0, %s19
    %p16 = scmp.ge.s32.totalorder %s15, 4
    %s25 = sphi 0, %s27
    %s28 = sphi 0, %s25
    %s29 = sphi 0, %s28
    %s45 = sphi 0, %s29
    %s49 = sphi 0, %s49
    %s51 = sphi 0, %s49
    %s52 = sphi 0, %s51
    %s66 = sphi 0, %s52
    %s70 = sphi 0, %s70
    %s72 = sphi 0, %s70
    %s73 = sphi 0, %s72
    %s87 = sphi 0, %s73
    %s91 = sphi 0, %s91
    %s93 = sphi 0, %s91
    %s94 = sphi 0, %s93
    %s108 = sphi 0, %s94
    %s112 = sphi 0, %s112
    %s114 = sphi 0, %s112
    %s115 = sphi 0, %s114
    %s129 = sphi 0, %s115
    %s133 = sphi 0, %s133
    %s135 = sphi 0, %s133
    %s136 = sphi 0, %s135
    %s150 = sphi 0, %s136
    %s154 = sphi 0, %s154
    %s156 = sphi 0, %s154
    %s157 = sphi 0, %s156
    %s171 = sphi 0, %s157
    %s175 = sphi 0, %s175
    %s177 = sphi 0, %s175
    %s178 = sphi 0, %s177
    %s192 = sphi 0, %s178
    %s196 = sphi 0, %s196
    %s198 = sphi 0, %s196
    %s199 = sphi 0, %s198
    %s213 = sphi 0, %s199
    %s219 = sphi 0, %s221
    %s222 = sphi 0, %s219
    %s223 = sphi 0, %s222
    %s239 = sphi 0, %s223
  $region4: #{generator_forward.1} parent=0 // loop_header_branch
    %18 = sbr.rel (%p16) target = $region8
  $region5: #{generator_forward.1} parent=0 // loop_body
    %s20 = ssub.s32 %s15, 1
    %s21 = ssub.s32 %s15, 2
    %s22 = sadd.s32 %s15, 1
    %s23 = ssub.s32 %s15, %s22
    %p24 = scmp.eq.s32.totalorder %s23, 0
    %s26 = sadd.s32 %s25, 1
    %s27 = scalar_select %p24, %s25, %s26
    %p30 = pneg %p24
    %p31 = scmp.eq.s32.totalorder %s15, 1
    %p32 = por %p30, %p31
    %p33 = scmp.ne.s32.totalorder %s25, %s28
    %p34 = scmp.eq.s32.totalorder %s15, 0
    %p35 = por %p33, %p34
    %p36 = scmp.ne.s32.totalorder %s25, %s28
    %p37 = scmp.eq.s32.totalorder %s20, 1
    %p38 = por %p36, %p37
    %p39 = scmp.ne.s32.totalorder %s28, %s29
    %p40 = scmp.eq.s32.totalorder %s20, 0
    %p41 = por %p39, %p40
    %p42 = scmp.ne.s32.totalorder %s28, %s29
    %p43 = scmp.eq.s32.totalorder %s21, 1
    %p44 = por %p42, %p43
    %p46 = scmp.ne.s32.totalorder %s29, %s45
    %p47 = scmp.eq.s32.totalorder %s21, 0
    %p48 = por %p46, %p47
    %s50 = sadd.s32 %s49, 1
    %p53 = scmp.eq.s32.totalorder %s15, 1
    %p54 = scmp.ne.s32.totalorder %s49, %s51
    %p55 = scmp.eq.s32.totalorder %s15, 0
    %p56 = por %p54, %p55
    %p57 = scmp.ne.s32.totalorder %s49, %s51
    %p58 = scmp.eq.s32.totalorder %s20, 1
    %p59 = por %p57, %p58
    %p60 = scmp.ne.s32.totalorder %s51, %s52
    %p61 = scmp.eq.s32.totalorder %s20, 0
    %p62 = por %p60, %p61
    %p63 = scmp.ne.s32.totalorder %s51, %s52
    %p64 = scmp.eq.s32.totalorder %s21, 1
    %p65 = por %p63, %p64
    %p67 = scmp.ne.s32.totalorder %s52, %s66
    %p68 = scmp.eq.s32.totalorder %s21, 0
    %p69 = por %p67, %p68
    %s71 = sadd.s32 %s70, 1
    %p74 = scmp.eq.s32.totalorder %s15, 1
    %p75 = scmp.ne.s32.totalorder %s70, %s72
    %p76 = scmp.eq.s32.totalorder %s15, 0
    %p77 = por %p75, %p76
    %p78 = scmp.ne.s32.totalorder %s70, %s72
    %p79 = scmp.eq.s32.totalorder %s20, 1
    %p80 = por %p78, %p79
    %p81 = scmp.ne.s32.totalorder %s72, %s73
    %p82 = scmp.eq.s32.totalorder %s20, 0
    %p83 = por %p81, %p82
    %p84 = scmp.ne.s32.totalorder %s72, %s73
    %p85 = scmp.eq.s32.totalorder %s21, 1
    %p86 = por %p84, %p85
    %p88 = scmp.ne.s32.totalorder %s73, %s87
    %p89 = scmp.eq.s32.totalorder %s21, 0
    %p90 = por %p88, %p89
    %s92 = sadd.s32 %s91, 1
    %p95 = scmp.eq.s32.totalorder %s15, 1
    %p96 = scmp.ne.s32.totalorder %s91, %s93
    %p97 = scmp.eq.s32.totalorder %s15, 0
    %p98 = por %p96, %p97
    %p99 = scmp.ne.s32.totalorder %s91, %s93
    %p100 = scmp.eq.s32.totalorder %s20, 1
    %p101 = por %p99, %p100
    %p102 = scmp.ne.s32.totalorder %s93, %s94
    %p103 = scmp.eq.s32.totalorder %s20, 0
    %p104 = por %p102, %p103
    %p105 = scmp.ne.s32.totalorder %s93, %s94
    %p106 = scmp.eq.s32.totalorder %s21, 1
    %p107 = por %p105, %p106
    %p109 = scmp.ne.s32.totalorder %s94, %s108
    %p110 = scmp.eq.s32.totalorder %s21, 0
    %p111 = por %p109, %p110
    %s113 = sadd.s32 %s112, 1
    %p116 = scmp.eq.s32.totalorder %s15, 1
    %p117 = scmp.ne.s32.totalorder %s112, %s114
    %p118 = scmp.eq.s32.totalorder %s15, 0
    %p119 = por %p117, %p118
    %p120 = scmp.ne.s32.totalorder %s112, %s114
    %p121 = scmp.eq.s32.totalorder %s20, 1
    %p122 = por %p120, %p121
    %p123 = scmp.ne.s32.totalorder %s114, %s115
    %p124 = scmp.eq.s32.totalorder %s20, 0
    %p125 = por %p123, %p124
    %p126 = scmp.ne.s32.totalorder %s114, %s115
    %p127 = scmp.eq.s32.totalorder %s21, 1
    %p128 = por %p126, %p127
    %p130 = scmp.ne.s32.totalorder %s115, %s129
    %p131 = scmp.eq.s32.totalorder %s21, 0
    %p132 = por %p130, %p131
    %s134 = sadd.s32 %s133, 1
    %p137 = scmp.eq.s32.totalorder %s15, 1
    %p138 = scmp.ne.s32.totalorder %s133, %s135
    %p139 = scmp.eq.s32.totalorder %s15, 0
    %p140 = por %p138, %p139
    %p141 = scmp.ne.s32.totalorder %s133, %s135
    %p142 = scmp.eq.s32.totalorder %s20, 1
    %p143 = por %p141, %p142
    %p144 = scmp.ne.s32.totalorder %s135, %s136
    %p145 = scmp.eq.s32.totalorder %s20, 0
    %p146 = por %p144, %p145
    %p147 = scmp.ne.s32.totalorder %s135, %s136
    %p148 = scmp.eq.s32.totalorder %s21, 1
    %p149 = por %p147, %p148
    %p151 = scmp.ne.s32.totalorder %s136, %s150
    %p152 = scmp.eq.s32.totalorder %s21, 0
    %p153 = por %p151, %p152
    %s155 = sadd.s32 %s154, 1
    %p158 = scmp.eq.s32.totalorder %s15, 1
    %p159 = scmp.ne.s32.totalorder %s154, %s156
    %p160 = scmp.eq.s32.totalorder %s15, 0
    %p161 = por %p159, %p160
    %p162 = scmp.ne.s32.totalorder %s154, %s156
    %p163 = scmp.eq.s32.totalorder %s20, 1
    %p164 = por %p162, %p163
    %p165 = scmp.ne.s32.totalorder %s156, %s157
    %p166 = scmp.eq.s32.totalorder %s20, 0
    %p167 = por %p165, %p166
    %p168 = scmp.ne.s32.totalorder %s156, %s157
    %p169 = scmp.eq.s32.totalorder %s21, 1
    %p170 = por %p168, %p169
    %p172 = scmp.ne.s32.totalorder %s157, %s171
    %p173 = scmp.eq.s32.totalorder %s21, 0
    %p174 = por %p172, %p173
    %s176 = sadd.s32 %s175, 1
    %p179 = scmp.eq.s32.totalorder %s15, 1
    %p180 = scmp.ne.s32.totalorder %s175, %s177
    %p181 = scmp.eq.s32.totalorder %s15, 0
    %p182 = por %p180, %p181
    %p183 = scmp.ne.s32.totalorder %s175, %s177
    %p184 = scmp.eq.s32.totalorder %s20, 1
    %p185 = por %p183, %p184
    %p186 = scmp.ne.s32.totalorder %s177, %s178
    %p187 = scmp.eq.s32.totalorder %s20, 0
    %p188 = por %p186, %p187
    %p189 = scmp.ne.s32.totalorder %s177, %s178
    %p190 = scmp.eq.s32.totalorder %s21, 1
    %p191 = por %p189, %p190
    %p193 = scmp.ne.s32.totalorder %s178, %s192
    %p194 = scmp.eq.s32.totalorder %s21, 0
    %p195 = por %p193, %p194
    %s197 = sadd.s32 %s196, 1
    %p200 = scmp.eq.s32.totalorder %s15, 1
    %p201 = scmp.ne.s32.totalorder %s196, %s198
    %p202 = scmp.eq.s32.totalorder %s15, 0
    %p203 = por %p201, %p202
    %p204 = scmp.ne.s32.totalorder %s196, %s198
    %p205 = scmp.eq.s32.totalorder %s20, 1
    %p206 = por %p204, %p205
    %p207 = scmp.ne.s32.totalorder %s198, %s199
    %p208 = scmp.eq.s32.totalorder %s20, 0
    %p209 = por %p207, %p208
    %p210 = scmp.ne.s32.totalorder %s198, %s199
    %p211 = scmp.eq.s32.totalorder %s21, 1
    %p212 = por %p210, %p211
    %p214 = scmp.ne.s32.totalorder %s199, %s213
    %p215 = scmp.eq.s32.totalorder %s21, 0
    %p216 = por %p214, %p215
    %s217 = ssub.s32 %s15, %s22
    %p218 = scmp.eq.s32.totalorder %s217, 0
    %s220 = sadd.s32 %s219, 1
    %s221 = scalar_select %p218, %s219, %s220
    %p224 = pneg %p218
    %p225 = scmp.eq.s32.totalorder %s15, 1
    %p226 = por %p224, %p225
    %p227 = scmp.ne.s32.totalorder %s219, %s222
    %p228 = scmp.eq.s32.totalorder %s15, 0
    %p229 = por %p227, %p228
    %p230 = scmp.ne.s32.totalorder %s219, %s222
    %p231 = scmp.eq.s32.totalorder %s20, 1
    %p232 = por %p230, %p231
    %p233 = scmp.ne.s32.totalorder %s222, %s223
    %p234 = scmp.eq.s32.totalorder %s20, 0
    %p235 = por %p233, %p234
    %p236 = scmp.ne.s32.totalorder %s222, %s223
    %p237 = scmp.eq.s32.totalorder %s21, 1
    %p238 = por %p236, %p237
    %p240 = scmp.ne.s32.totalorder %s223, %s239
    %p241 = scmp.eq.s32.totalorder %s21, 0
    %p242 = por %p240, %p241
    %p243 = scmp.le.s32.totalorder 1, %s15
    %p244 = scmp.lt.s32.totalorder %s15, 3
    %p245 = pnand %p243, %p244
    %p246 = pneg %p245
    // Predicated region
    $region9: #{generator_forward.1} parent=5 // pred_check
      _
    $region10: #{generator_forward.1} parent=5 // pred_check_branch
      %248 = sbr.rel (%p245) target = $region12
    $region11: #{generator_forward.1} parent=5 // pred_region
      %s249 = ssub.s32 %s15, 1
      // Predicated region
      $region13: #{generator_forward.1} parent=11 // pred_check
        %p250 = pneg %p62
      $region14: #{generator_forward.1} parent=11 // pred_check_branch
        %252 = sbr.rel (%p250) target = $region16
      $region15: #{generator_forward.1} parent=11 // pred_region
        _
      $region16: #{generator_forward.1} parent=11 // pred_fallthru
        _
      // Predicated region
      $region17: #{generator_forward.1} parent=11 // pred_check
        %p253 = pneg %p83
      $region18: #{generator_forward.1} parent=11 // pred_check_branch
        %255 = sbr.rel (%p253) target = $region20
      $region19: #{generator_forward.1} parent=11 // pred_region
        _
      $region20: #{generator_forward.1} parent=11 // pred_fallthru
        _
      // Predicated region
      $region21: #{generator_forward.1} parent=11 // pred_check
        %p256 = pneg %p104
      $region22: #{generator_forward.1} parent=11 // pred_check_branch
        %258 = sbr.rel (%p256) target = $region24
      $region23: #{generator_forward.1} parent=11 // pred_region
        _
      $region24: #{generator_forward.1} parent=11 // pred_fallthru
        _
      // Predicated region
      $region25: #{generator_forward.1} parent=11 // pred_check
        %p259 = pneg %p125
      $region26: #{generator_forward.1} parent=11 // pred_check_branch
        %261 = sbr.rel (%p259) target = $region28
      $region27: #{generator_forward.1} parent=11 // pred_region
        _
      $region28: #{generator_forward.1} parent=11 // pred_fallthru
        _
      // Predicated region
      $region29: #{generator_forward.1} parent=11 // pred_check
        %p262 = pneg %p146
      $region30: #{generator_forward.1} parent=11 // pred_check_branch
        %264 = sbr.rel (%p262) target = $region32
      $region31: #{generator_forward.1} parent=11 // pred_region
        _
      $region32: #{generator_forward.1} parent=11 // pred_fallthru
        _
      // Predicated region
      $region33: #{generator_forward.1} parent=11 // pred_check
        %p265 = pneg %p167
      $region34: #{generator_forward.1} parent=11 // pred_check_branch
        %267 = sbr.rel (%p265) target = $region36
      $region35: #{generator_forward.1} parent=11 // pred_region
        _
      $region36: #{generator_forward.1} parent=11 // pred_fallthru
        _
      // Predicated region
      $region37: #{generator_forward.1} parent=11 // pred_check
        %p268 = pneg %p188
      $region38: #{generator_forward.1} parent=11 // pred_check_branch
        %270 = sbr.rel (%p268) target = $region40
      $region39: #{generator_forward.1} parent=11 // pred_region
        _
      $region40: #{generator_forward.1} parent=11 // pred_fallthru
        _
      // Predicated region
      $region41: #{generator_forward.1} parent=11 // pred_check
        %p271 = pneg %p209
      $region42: #{generator_forward.1} parent=11 // pred_check_branch
        %273 = sbr.rel (%p271) target = $region44
      $region43: #{generator_forward.1} parent=11 // pred_region
        _
      $region44: #{generator_forward.1} parent=11 // pred_fallthru
        _
    $region12: #{generator_forward.1} parent=5 // pred_fallthru
      _
    %p274 = scmp.lt.s32.totalorder %s15, 2
    // Predicated region
    $region45: #{generator_forward.1} parent=5 // pred_check
      %p275 = pneg %p274
    $region46: #{generator_forward.1} parent=5 // pred_check_branch
      %277 = sbr.rel (%p275) target = $region48
    $region47: #{generator_forward.1} parent=5 // pred_region
      // Predicated region
      $region49: #{generator_forward.1} parent=47 // pred_check
        %p278 = pneg %p35
      $region50: #{generator_forward.1} parent=47 // pred_check_branch
        %280 = sbr.rel (%p278) target = $region52
      $region51: #{generator_forward.1} parent=47 // pred_region
        %p281 = scmp.lt.s32.totalorder %s15, 1
        %s282 = scalar_select %p281, %s15, 1
        %s283 = smul.addr %s282, 8
        %s284 = scalar_lea.vmem %s0, %s283
      $region52: #{generator_forward.1} parent=47 // pred_fallthru
        _
    $region48: #{generator_forward.1} parent=5 // pred_fallthru
      _
    %p285 = scmp.le.s32.totalorder 1, %s15
    %p286 = scmp.lt.s32.totalorder %s15, 3
    %p287 = pnand %p285, %p286
    %p288 = pneg %p287
    // Predicated region
    $region53: #{generator_forward.1} parent=5 // pred_check
      _
    $region54: #{generator_forward.1} parent=5 // pred_check_branch
      %290 = sbr.rel (%p287) target = $region56
    $region55: #{generator_forward.1} parent=5 // pred_region
      %s291 = ssub.s32 %s15, 1
      %p292 = scmp.lt.s32.totalorder %s20, 1
      %s293 = scalar_select %p292, %s20, 1
      %s294 = smul.addr %s293, 8
      %s295 = scalar_lea.vmem %s0, %s294
      %p296 = pneg %p41
      %p297 = pneg %p38
      %p298 = pneg %p62
      %p299 = pneg %p59
      %p300 = pneg %p83
      %p301 = pneg %p80
      %p302 = pneg %p104
      %p303 = pneg %p101
      %p304 = pneg %p125
      %p305 = pneg %p122
      %p306 = pneg %p146
      %p307 = pneg %p143
      %p308 = pneg %p167
      %p309 = pneg %p164
      %p310 = pneg %p188
      %p311 = pneg %p185
      %p312 = pneg %p209
      %p313 = pneg %p206
      %p314 = pneg %p235
      %p315 = pneg %p232
      %p316 = scmp.lt.s32.totalorder %s20, 1
      %s317 = scalar_select %p316, %s20, 1
      %s318 = smul.addr %s317, 8
      %s319 = scalar_lea.vmem %s9, %s318
      %p320 = scmp.lt.s32.totalorder %s20, 1
      %s321 = scalar_select %p320, %s20, 1
      %s322 = smul.addr %s321, 8
      %s323 = scalar_lea.vmem %s0, %s322
      %p324 = scmp.lt.s32.totalorder %s20, 1
      %s325 = scalar_select %p324, %s20, 1
      %s326 = smul.addr %s325, 8
      %s327 = scalar_lea.vmem %s9, %s326
      %v328 = vld [vmem:[%s323] sm:$0xff]
      %v329 = vld [vmem:[%s1] sm:$0xff]
      %v330 = vld [vmem:[%s1 + $0x8] sm:$0xff]
      %v331 = vld [vmem:[%s2] sm:$0x1]
      %v333 = vlaneseq
      %v334 = vshrl.u32 %v333, 7
      %v335 = vsub.s32 0, %v334
      %v336 = vrot.slane %v331, %v335
      %vm338 = vcmask 130048
      %v340 = vsel %vm338, %v328, 0
      %342 = vmatprep.subr.mxu0 0.0
      %343 = vmatpush1.msra.mxu0 0.0
      %344 = vmatprep.subr.mxu0 0.0
      %345 = vmatpush1.msra.mxu0 0.0
      %346 = vmatprep.subr.mxu0 0.0
      %347 = vmatpush1.msra.mxu0 0.0
      %348 = vmatprep.subr.mxu0 0.0
      %349 = vmatpush1.msra.mxu0 0.0
      %350 = vmatprep.subr.mxu0 0.0
      %351 = vmatpush1.msra.mxu0 0.0
      %352 = vmatprep.subr.mxu0 0.0
      %353 = vmatpush1.msra.mxu0 0.0
      %354 = vmatprep.subr.mxu0 0.0
      %355 = vmatpush1.msra.mxu0 0.0
      %356 = vmatprep.subr.mxu0 0.0
      %357 = vmatpush1.msra.mxu0 0.0
      %358 = vmatprep.subr.mxu0 0.0
      %359 = vmatpush1.msra.mxu0 0.0
      %360 = vmatprep.subr.mxu0 0.0
      %361 = vmatpush1.msra.mxu0 0.0
      %362 = vmatprep.subr.mxu0 0.0
      %363 = vmatpush1.msra.mxu0 0.0
      %364 = vmatprep.subr.mxu0 0.0
      %365 = vmatpush1.msra.mxu0 0.0
      %366 = vmatprep.subr.mxu0 0.0
      %367 = vmatpush1.msra.mxu0 0.0
      %368 = vmatprep.subr.mxu0 0.0
      %369 = vmatpush1.msra.mxu0 0.0
      %370 = vmatprep.subr.mxu0 0.0
      %371 = vmatpush1.msra.mxu0 %v330
      %372 = vmatprep.subr.mxu0 0.0
      %373 = vmatpush1.msra.mxu0 %v329
      %374 = vmatprep.subr.mxu0 0.0
      %375 = vmatpush2.msra.mxu0 0.0
      %376 = vmatprep.subr.mxu0 0.0
      %377 = vmatpush2.msra.mxu0 0.0
      %378 = vmatprep.subr.mxu0 0.0
      %379 = vmatpush2.msra.mxu0 0.0
      %380 = vmatprep.subr.mxu0 0.0
      %381 = vmatpush2.msra.mxu0 0.0
      %382 = vmatprep.subr.mxu0 0.0
      %383 = vmatpush2.msra.mxu0 0.0
      %384 = vmatprep.subr.mxu0 0.0
      %385 = vmatpush2.msra.mxu0 0.0
      %386 = vmatprep.subr.mxu0 0.0
      %387 = vmatpush2.msra.mxu0 0.0
      %388 = vmatprep.subr.mxu0 0.0
      %389 = vmatpush2.msra.mxu0 0.0
      %390 = vmatprep.subr.mxu0 0.0
      %391 = vmatpush2.msra.mxu0 0.0
      %392 = vmatprep.subr.mxu0 0.0
      %393 = vmatpush2.msra.mxu0 0.0
      %394 = vmatprep.subr.mxu0 0.0
      %395 = vmatpush2.msra.mxu0 0.0
      %396 = vmatprep.subr.mxu0 0.0
      %397 = vmatpush2.msra.mxu0 0.0
      %398 = vmatprep.subr.mxu0 0.0
      %399 = vmatpush2.msra.mxu0 0.0
      %400 = vmatprep.subr.mxu0 0.0
      %401 = vmatpush2.msra.mxu0 0.0
      %402 = vmatprep.subr.mxu0 0.0
      %403 = vmatpush2.msra.mxu0 0.0
      %404 = vmatprep.subr.mxu0 0.0
      %405 = vmatpush2.msra.mxu0 0.0
      %406 = vmatprep.mubr.f32.mxu0 0.0
      %407 = vmatmul.mubr.f32.gmra.mxu0 %v340
      %v408 = vpop.f32.mrf.mxu0
      %v409 = vadd.f32 %v336, %v408
      %v410 = vpop.f32.mrf.mxu0
      %411 = vdwg.mxu0
      %v412 = vmax.f32 %v409, 0.0
      %v413 = vld [vmem:[%s3] sm:$0xff]
      %v414 = vld [vmem:[%s3 + $0x8] sm:$0xff]
      %v415 = vld [vmem:[%s3 + $0x10] sm:$0xff]
      %v416 = vld [vmem:[%s3 + $0x18] sm:$0xff]
      %v417 = vld [vmem:[%s3 + $0x20] sm:$0xff]
      %v418 = vld [vmem:[%s3 + $0x28] sm:$0xff]
      %v419 = vld [vmem:[%s3 + $0x30] sm:$0xff]
      %v420 = vld [vmem:[%s3 + $0x38] sm:$0xff]
      %v421 = vld [vmem:[%s3 + $0x40] sm:$0xff]
      %v422 = vld [vmem:[%s3 + $0x48] sm:$0xff]
      %v423 = vld [vmem:[%s3 + $0x50] sm:$0xff]
      %v424 = vld [vmem:[%s3 + $0x58] sm:$0xff]
      %v425 = vld [vmem:[%s3 + $0x60] sm:$0xff]
      %v426 = vld [vmem:[%s3 + $0x68] sm:$0xff]
      %v427 = vld [vmem:[%s3 + $0x70] sm:$0xff]
      %v428 = vld [vmem:[%s3 + $0x78] sm:$0xff]
      %v429 = vld [vmem:[%s4] sm:$0x1]
      %v431 = vlaneseq
      %v432 = vshrl.u32 %v431, 7
      %v433 = vsub.s32 0, %v432
      %v434 = vrot.slane %v429, %v433
      %436 = vmatprep.subr.mxu0 0.0
      %437 = vmatpush1.msra.mxu0 %v428
      %438 = vmatprep.subr.mxu0 0.0
      %439 = vmatpush1.msra.mxu0 %v427
      %440 = vmatprep.subr.mxu0 0.0
      %441 = vmatpush1.msra.mxu0 %v426
      %442 = vmatprep.subr.mxu0 0.0
      %443 = vmatpush1.msra.mxu0 %v425
      %444 = vmatprep.subr.mxu0 0.0
      %445 = vmatpush1.msra.mxu0 %v424
      %446 = vmatprep.subr.mxu0 0.0
      %447 = vmatpush1.msra.mxu0 %v423
      %448 = vmatprep.subr.mxu0 0.0
      %449 = vmatpush1.msra.mxu0 %v422
      %450 = vmatprep.subr.mxu0 0.0
      %451 = vmatpush1.msra.mxu0 %v421
      %452 = vmatprep.subr.mxu0 0.0
      %453 = vmatpush1.msra.mxu0 %v420
      %454 = vmatprep.subr.mxu0 0.0
      %455 = vmatpush1.msra.mxu0 %v419
      %456 = vmatprep.subr.mxu0 0.0
      %457 = vmatpush1.msra.mxu0 %v418
      %458 = vmatprep.subr.mxu0 0.0
      %459 = vmatpush1.msra.mxu0 %v417
      %460 = vmatprep.subr.mxu0 0.0
      %461 = vmatpush1.msra.mxu0 %v416
      %462 = vmatprep.subr.mxu0 0.0
      %463 = vmatpush1.msra.mxu0 %v415
      %464 = vmatprep.subr.mxu0 0.0
      %465 = vmatpush1.msra.mxu0 %v414
      %466 = vmatprep.subr.mxu0 0.0
      %467 = vmatpush1.msra.mxu0 %v413
      %468 = vmatprep.subr.mxu0 0.0
      %469 = vmatpush2.msra.mxu0 0.0
      %470 = vmatprep.subr.mxu0 0.0
      %471 = vmatpush2.msra.mxu0 0.0
      %472 = vmatprep.subr.mxu0 0.0
      %473 = vmatpush2.msra.mxu0 0.0
      %474 = vmatprep.subr.mxu0 0.0
      %475 = vmatpush2.msra.mxu0 0.0
      %476 = vmatprep.subr.mxu0 0.0
      %477 = vmatpush2.msra.mxu0 0.0
      %478 = vmatprep.subr.mxu0 0.0
      %479 = vmatpush2.msra.mxu0 0.0
      %480 = vmatprep.subr.mxu0 0.0
      %481 = vmatpush2.msra.mxu0 0.0
      %482 = vmatprep.subr.mxu0 0.0
      %483 = vmatpush2.msra.mxu0 0.0
      %484 = vmatprep.subr.mxu0 0.0
      %485 = vmatpush2.msra.mxu0 0.0
      %486 = vmatprep.subr.mxu0 0.0
      %487 = vmatpush2.msra.mxu0 0.0
      %488 = vmatprep.subr.mxu0 0.0
      %489 = vmatpush2.msra.mxu0 0.0
      %490 = vmatprep.subr.mxu0 0.0
      %491 = vmatpush2.msra.mxu0 0.0
      %492 = vmatprep.subr.mxu0 0.0
      %493 = vmatpush2.msra.mxu0 0.0
      %494 = vmatprep.subr.mxu0 0.0
      %495 = vmatpush2.msra.mxu0 0.0
      %496 = vmatprep.subr.mxu0 0.0
      %497 = vmatpush2.msra.mxu0 0.0
      %498 = vmatprep.subr.mxu0 0.0
      %499 = vmatpush2.msra.mxu0 0.0
      %500 = vmatprep.mubr.f32.mxu0 0.0
      %501 = vmatmul.mubr.f32.gmra.mxu0 %v412
      %v502 = vpop.f32.mrf.mxu0
      %v503 = vadd.f32 %v434, %v502
      %v504 = vpop.f32.mrf.mxu0
      %505 = vdwg.mxu0
      %v506 = vmax.f32 %v503, 0.0
      %v507 = vld [vmem:[%s5] sm:$0xff]
      %v508 = vld [vmem:[%s5 + $0x8] sm:$0xff]
      %v509 = vld [vmem:[%s5 + $0x10] sm:$0xff]
      %v510 = vld [vmem:[%s5 + $0x18] sm:$0xff]
      %v511 = vld [vmem:[%s5 + $0x20] sm:$0xff]
      %v512 = vld [vmem:[%s5 + $0x28] sm:$0xff]
      %v513 = vld [vmem:[%s5 + $0x30] sm:$0xff]
      %v514 = vld [vmem:[%s5 + $0x38] sm:$0xff]
      %v515 = vld [vmem:[%s5 + $0x40] sm:$0xff]
      %v516 = vld [vmem:[%s5 + $0x48] sm:$0xff]
      %v517 = vld [vmem:[%s5 + $0x50] sm:$0xff]
      %v518 = vld [vmem:[%s5 + $0x58] sm:$0xff]
      %v519 = vld [vmem:[%s5 + $0x60] sm:$0xff]
      %v520 = vld [vmem:[%s5 + $0x68] sm:$0xff]
      %v521 = vld [vmem:[%s5 + $0x70] sm:$0xff]
      %v522 = vld [vmem:[%s5 + $0x78] sm:$0xff]
      %v523 = vld [vmem:[%s6] sm:$0x1]
      %v525 = vlaneseq
      %v526 = vshrl.u32 %v525, 7
      %v527 = vsub.s32 0, %v526
      %v528 = vrot.slane %v523, %v527
      %530 = vmatprep.subr.mxu0 0.0
      %531 = vmatpush1.msra.mxu0 %v522
      %532 = vmatprep.subr.mxu0 0.0
      %533 = vmatpush1.msra.mxu0 %v521
      %534 = vmatprep.subr.mxu0 0.0
      %535 = vmatpush1.msra.mxu0 %v520
      %536 = vmatprep.subr.mxu0 0.0
      %537 = vmatpush1.msra.mxu0 %v519
      %538 = vmatprep.subr.mxu0 0.0
      %539 = vmatpush1.msra.mxu0 %v518
      %540 = vmatprep.subr.mxu0 0.0
      %541 = vmatpush1.msra.mxu0 %v517
      %542 = vmatprep.subr.mxu0 0.0
      %543 = vmatpush1.msra.mxu0 %v516
      %544 = vmatprep.subr.mxu0 0.0
      %545 = vmatpush1.msra.mxu0 %v515
      %546 = vmatprep.subr.mxu0 0.0
      %547 = vmatpush1.msra.mxu0 %v514
      %548 = vmatprep.subr.mxu0 0.0
      %549 = vmatpush1.msra.mxu0 %v513
      %550 = vmatprep.subr.mxu0 0.0
      %551 = vmatpush1.msra.mxu0 %v512
      %552 = vmatprep.subr.mxu0 0.0
      %553 = vmatpush1.msra.mxu0 %v511
      %554 = vmatprep.subr.mxu0 0.0
      %555 = vmatpush1.msra.mxu0 %v510
      %556 = vmatprep.subr.mxu0 0.0
      %557 = vmatpush1.msra.mxu0 %v509
      %558 = vmatprep.subr.mxu0 0.0
      %559 = vmatpush1.msra.mxu0 %v508
      %560 = vmatprep.subr.mxu0 0.0
      %561 = vmatpush1.msra.mxu0 %v507
      %562 = vmatprep.subr.mxu0 0.0
      %563 = vmatpush2.msra.mxu0 0.0
      %564 = vmatprep.subr.mxu0 0.0
      %565 = vmatpush2.msra.mxu0 0.0
      %566 = vmatprep.subr.mxu0 0.0
      %567 = vmatpush2.msra.mxu0 0.0
      %568 = vmatprep.subr.mxu0 0.0
      %569 = vmatpush2.msra.mxu0 0.0
      %570 = vmatprep.subr.mxu0 0.0
      %571 = vmatpush2.msra.mxu0 0.0
      %572 = vmatprep.subr.mxu0 0.0
      %573 = vmatpush2.msra.mxu0 0.0
      %574 = vmatprep.subr.mxu0 0.0
      %575 = vmatpush2.msra.mxu0 0.0
      %576 = vmatprep.subr.mxu0 0.0
      %577 = vmatpush2.msra.mxu0 0.0
      %578 = vmatprep.subr.mxu0 0.0
      %579 = vmatpush2.msra.mxu0 0.0
      %580 = vmatprep.subr.mxu0 0.0
      %581 = vmatpush2.msra.mxu0 0.0
      %582 = vmatprep.subr.mxu0 0.0
      %583 = vmatpush2.msra.mxu0 0.0
      %584 = vmatprep.subr.mxu0 0.0
      %585 = vmatpush2.msra.mxu0 0.0
      %586 = vmatprep.subr.mxu0 0.0
      %587 = vmatpush2.msra.mxu0 0.0
      %588 = vmatprep.subr.mxu0 0.0
      %589 = vmatpush2.msra.mxu0 0.0
      %590 = vmatprep.subr.mxu0 0.0
      %591 = vmatpush2.msra.mxu0 0.0
      %592 = vmatprep.subr.mxu0 0.0
      %593 = vmatpush2.msra.mxu0 0.0
      %594 = vmatprep.mubr.f32.mxu0 0.0
      %595 = vmatmul.mubr.f32.gmra.mxu0 %v506
      %v596 = vpop.f32.mrf.mxu0
      %v597 = vadd.f32 %v528, %v596
      %v598 = vpop.f32.mrf.mxu0
      %599 = vdwg.mxu0
      %v600 = vxor.u32 %v597, 2147483648
      %v601 = vmul.f32 %v600, 1.442695
      %v602 = vpow.pop %v601
      %v603 = vadd.f32 %v602, 1.0
      %v604 = vrcp.pop %v603
      %v605 = vmul.f32 1.0, %v604
      %v606 = vld [vmem:[%s7] sm:$0xff]
      %v607 = vld [vmem:[%s7 + $0x8] sm:$0xff]
      %v608 = vld [vmem:[%s7 + $0x10] sm:$0xff]
      %v609 = vld [vmem:[%s7 + $0x18] sm:$0xff]
      %v610 = vld [vmem:[%s7 + $0x20] sm:$0xff]
      %v611 = vld [vmem:[%s7 + $0x28] sm:$0xff]
      %v612 = vld [vmem:[%s7 + $0x30] sm:$0xff]
      %v613 = vld [vmem:[%s7 + $0x38] sm:$0xff]
      %v614 = vld [vmem:[%s7 + $0x40] sm:$0xff]
      %v615 = vld [vmem:[%s7 + $0x48] sm:$0xff]
      %v616 = vld [vmem:[%s7 + $0x50] sm:$0xff]
      %v617 = vld [vmem:[%s7 + $0x58] sm:$0xff]
      %v618 = vld [vmem:[%s7 + $0x60] sm:$0xff]
      %v619 = vld [vmem:[%s7 + $0x68] sm:$0xff]
      %v620 = vld [vmem:[%s7 + $0x70] sm:$0xff]
      %v621 = vld [vmem:[%s7 + $0x78] sm:$0xff]
      %v622 = vld [vmem:[%s8] sm:$0x1]
      %v624 = vlaneseq
      %v625 = vshrl.u32 %v624, 7
      %v626 = vsub.s32 0, %v625
      %v627 = vrot.slane %v622, %v626
      %629 = vmatprep.subr.mxu0 0.0
      %630 = vmatpush1.msra.mxu0 %v621
      %631 = vmatprep.subr.mxu0 0.0
      %632 = vmatpush1.msra.mxu0 %v620
      %633 = vmatprep.subr.mxu0 0.0
      %634 = vmatpush1.msra.mxu0 %v619
      %635 = vmatprep.subr.mxu0 0.0
      %636 = vmatpush1.msra.mxu0 %v618
      %637 = vmatprep.subr.mxu0 0.0
      %638 = vmatpush1.msra.mxu0 %v617
      %639 = vmatprep.subr.mxu0 0.0
      %640 = vmatpush1.msra.mxu0 %v616
      %641 = vmatprep.subr.mxu0 0.0
      %642 = vmatpush1.msra.mxu0 %v615
      %643 = vmatprep.subr.mxu0 0.0
      %644 = vmatpush1.msra.mxu0 %v614
      %645 = vmatprep.subr.mxu0 0.0
      %646 = vmatpush1.msra.mxu0 %v613
      %647 = vmatprep.subr.mxu0 0.0
      %648 = vmatpush1.msra.mxu0 %v612
      %649 = vmatprep.subr.mxu0 0.0
      %650 = vmatpush1.msra.mxu0 %v611
      %651 = vmatprep.subr.mxu0 0.0
      %652 = vmatpush1.msra.mxu0 %v610
      %653 = vmatprep.subr.mxu0 0.0
      %654 = vmatpush1.msra.mxu0 %v609
      %655 = vmatprep.subr.mxu0 0.0
      %656 = vmatpush1.msra.mxu0 %v608
      %657 = vmatprep.subr.mxu0 0.0
      %658 = vmatpush1.msra.mxu0 %v607
      %659 = vmatprep.subr.mxu0 0.0
      %660 = vmatpush1.msra.mxu0 %v606
      %661 = vmatprep.subr.mxu0 0.0
      %662 = vmatpush2.msra.mxu0 0.0
      %663 = vmatprep.subr.mxu0 0.0
      %664 = vmatpush2.msra.mxu0 0.0
      %665 = vmatprep.subr.mxu0 0.0
      %666 = vmatpush2.msra.mxu0 0.0
      %667 = vmatprep.subr.mxu0 0.0
      %668 = vmatpush2.msra.mxu0 0.0
      %669 = vmatprep.subr.mxu0 0.0
      %670 = vmatpush2.msra.mxu0 0.0
      %671 = vmatprep.subr.mxu0 0.0
      %672 = vmatpush2.msra.mxu0 0.0
      %673 = vmatprep.subr.mxu0 0.0
      %674 = vmatpush2.msra.mxu0 0.0
      %675 = vmatprep.subr.mxu0 0.0
      %676 = vmatpush2.msra.mxu0 0.0
      %677 = vmatprep.subr.mxu0 0.0
      %678 = vmatpush2.msra.mxu0 0.0
      %679 = vmatprep.subr.mxu0 0.0
      %680 = vmatpush2.msra.mxu0 0.0
      %681 = vmatprep.subr.mxu0 0.0
      %682 = vmatpush2.msra.mxu0 0.0
      %683 = vmatprep.subr.mxu0 0.0
      %684 = vmatpush2.msra.mxu0 0.0
      %685 = vmatprep.subr.mxu0 0.0
      %686 = vmatpush2.msra.mxu0 0.0
      %687 = vmatprep.subr.mxu0 0.0
      %688 = vmatpush2.msra.mxu0 0.0
      %689 = vmatprep.subr.mxu0 0.0
      %690 = vmatpush2.msra.mxu0 0.0
      %691 = vmatprep.subr.mxu0 0.0
      %692 = vmatpush2.msra.mxu0 0.0
      %693 = vmatprep.mubr.f32.mxu0 0.0
      %694 = vmatmul.mubr.f32.gmra.mxu0 %v605
      %v695 = vpop.f32.mrf.mxu0
      %v696 = vadd.f32 %v627, %v695
      %v697 = vpop.f32.mrf.mxu0
      %698 = vdwg.mxu0
      %vm699 = vcmask 64512
      %700 = vst.msk [vmem:[%s327] sm:$0xff] %vm699, %v696
      %p701 = scmp.lt.s32.totalorder %s20, 1
      %s702 = scalar_select %p701, %s20, 1
      %s703 = smul.addr %s702, 8
      %s704 = scalar_lea.vmem %s9, %s703
      // Predicated region
      $region57: #{generator_forward.1} parent=55 // pred_check
        %p705 = pneg %p232
      $region58: #{generator_forward.1} parent=55 // pred_check_branch
        %707 = sbr.rel (%p705) target = $region60
      $region59: #{generator_forward.1} parent=55 // pred_region
        _
      $region60: #{generator_forward.1} parent=55 // pred_fallthru
        _
    $region56: #{generator_forward.1} parent=5 // pred_fallthru
      _
    %p708 = scmp.le.s32.totalorder 2, %s15
    // Predicated region
    $region61: #{generator_forward.1} parent=5 // pred_check
      %p709 = pneg %p708
    $region62: #{generator_forward.1} parent=5 // pred_check_branch
      %711 = sbr.rel (%p709) target = $region64
    $region63: #{generator_forward.1} parent=5 // pred_region
      %s712 = ssub.s32 %s15, 2
      // Predicated region
      $region65: #{generator_forward.1} parent=63 // pred_check
        %p713 = pneg %p238
      $region66: #{generator_forward.1} parent=63 // pred_check_branch
        %715 = sbr.rel (%p713) target = $region68
      $region67: #{generator_forward.1} parent=63 // pred_region
        %p716 = scmp.lt.s32.totalorder %s21, 1
        %s717 = scalar_select %p716, %s21, 1
        %s718 = smul.addr %s717, 8
        %s719 = scalar_lea.vmem %s9, %s718
      $region68: #{generator_forward.1} parent=63 // pred_fallthru
        _
    $region64: #{generator_forward.1} parent=5 // pred_fallthru
      _
  $region6: #{generator_forward.1} parent=0 // loop_footer
    %s19 = sadd.s32 1, %s15
  $region7: #{generator_forward.1} parent=0 // loop_footer_branch
    %14 = sbr.rel target = $region3
  $region8: #{generator_forward.1} parent=0 // loop_exit
    _

</llo_original>
